<compile_context>
chip_gen: v7x
topology: tpu7x:2x2x1
jax: 0.10.0
libtpu: 0.0.40
codegen_flags: <defaults>
</compile_context>

<pallas_src>
import functools

import jax
import jax.numpy as jnp
from jax.experimental import pallas as pl
from jax.experimental.pallas import tpu as pltpu


def _round_up(x, m):
    return (x + m - 1) // m * m


def _choose_tm(m, tm_req):
    """M-tile size: multiple of 8, close to the request, and (when cheap) an even number
    of grid tiles so v7x's two TensorCores split the "parallel" M axis evenly."""
    tm0 = max(8, min(_round_up(tm_req, 8), _round_up(m, 8)))
    g0 = pl.cdiv(m, tm0)
    if g0 <= 1 or g0 % 2 == 0:
        return tm0
    for g in (g0 + 1, g0 - 1):
        if g >= 2 and g % 2 == 0:
            tm_c = _round_up(pl.cdiv(m, g), 8)
            if tm_c <= 2 * tm0 and pl.cdiv(m, tm_c) % 2 == 0:
                return tm_c
    return tm0


def _patch_embed_kernel(p_ref, w_ref, b_ref, o_ref):
    # p_ref: (TM, K) patch tile; w_ref: (K, E) VMEM-resident weight;
    # b_ref: (1, E) f32 bias;    o_ref: (TM, E) output tile.
    acc = jnp.dot(p_ref[...], w_ref[...], preferred_element_type=jnp.float32)
    o_ref[...] = (acc + b_ref[...]).astype(o_ref.dtype)


def _patch_embed_matmul(patches, w2d, b2d, *, tm, out_dtype):
    """patches: (M, K), w2d: (K, E), b2d: (1, E) f32 -> (M, E) in out_dtype."""
    m, k = patches.shape
    _, e = w2d.shape
    grid_m = pl.cdiv(m, tm)

    in_item = jnp.dtype(patches.dtype).itemsize
    w_item = jnp.dtype(w2d.dtype).itemsize
    out_item = jnp.dtype(out_dtype).itemsize
    # Double-buffered patch + out tiles, weight/bias counted x2 (the pipeline allocates two
    # buffers even though the constant block index means they are only DMA'd once), the
    # (tm, E) f32 dot accumulator, plus 2 MiB slack for Mosaic internal scratch.
    vmem_bytes = int(2 * tm * k * in_item + 2 * tm * e * out_item
                     + 2 * k * e * w_item + 2 * e * 4
                     + tm * e * 4) + (2 << 20)
    vmem_bytes = max(vmem_bytes, 4 << 20)
    vmem_bytes = min(vmem_bytes, 48 << 20)   # headroom under v7x's 64 MiB physical VMEM

    cost = pl.CostEstimate(
        flops=2 * m * k * e,
        transcendentals=0,
        bytes_accessed=in_item * m * k + w_item * k * e + out_item * m * e + 4 * e,
    )

    return pl.pallas_call(
        _patch_embed_kernel,
        out_shape=jax.ShapeDtypeStruct((m, e), out_dtype),
        grid=(grid_m,),
        in_specs=[
            pl.BlockSpec((tm, k), lambda i: (i, 0)),   # streamed M tiles, full-K block (no pad)
            pl.BlockSpec((k, e), lambda i: (0, 0)),    # weight: constant block -> VMEM-resident
            pl.BlockSpec((1, e), lambda i: (0, 0)),    # bias:   constant block -> VMEM-resident
        ],
        out_specs=pl.BlockSpec((tm, e), lambda i: (i, 0)),
        compiler_params=pltpu.CompilerParams(
            dimension_semantics=("parallel",),         # independent M tiles (v7x 2-TC sharding)
            vmem_limit_bytes=vmem_bytes,
        ),
        cost_estimate=cost,
    )(patches, w2d, b2d)


def prepare_patch_embed_params(weight, bias, *, data_format="NCHW", use_bf16_matmul=True):
    """One-time param prep (hoist out of the per-call path for inference):
    PyTorch Conv2d weight (E, C, P, P) -> (K, E) in the patch-row flattening order,
    bias -> (1, E) float32."""
    e, c, p, _ = weight.shape
    if data_format == "NCHW":
        w2d = weight.reshape(e, c * p * p).T                                # rows (c, ph, pw)
    elif data_format == "NHWC":
        w2d = jnp.transpose(weight, (0, 2, 3, 1)).reshape(e, p * p * c).T   # rows (ph, pw, c)
    else:
        raise ValueError(f"unknown data_format {data_format}")
    if use_bf16_matmul:
        w2d = w2d.astype(jnp.bfloat16)
    b2d = jnp.reshape(bias, (1, -1)).astype(jnp.float32)
    return w2d, b2d


@functools.partial(
    jax.jit,
    static_argnames=("patch_size", "tm", "extra_padding", "use_bf16_matmul",
                     "data_format", "output_layout"),
)
def patch_embed_forward(x, weight, bias, *, patch_size, tm=1024, extra_padding=False,
                        use_bf16_matmul=True, data_format="NCHW", output_layout="NCHW"):
    """PatchEmbed forward (patch_conv_type='linear').

    x: (B, C, H, W) for data_format="NCHW" (PyTorch semantics) or (B, H, W, C) for "NHWC".
    weight: raw PyTorch Conv2d weight (E, C, P, P) or a pre-prepared (K, E) matrix from
            prepare_patch_embed_params.   bias: (E,) or (1, E).
    output_layout: "NCHW" (default, == nn.Conv2d output), "NHWC", or "NLC" ((B, N, E) —
            TPU fast path that skips the channel-first restore).
    """
    P = patch_size
    out_dtype = x.dtype

    if data_format == "NCHW":
        B, C, H, W = x.shape
    elif data_format == "NHWC":
        B, H, W, C = x.shape
    else:
        raise ValueError(f"unknown data_format {data_format}")

    if extra_padding and (H % P != 0 or W % P != 0):
        # Mirrors the PyTorch F.pad branch exactly (pure glue, outside the kernel).
        p_l = (P - W % P) // 2
        p_r = (P - W % P) - p_l
        p_t = (P - H % P) // 2
        p_b = (P - H % P) - p_t
        if data_format == "NCHW":
            x = jnp.pad(x, ((0, 0), (0, 0), (p_t, p_b), (p_l, p_r)))
            B, C, H, W = x.shape
        else:
            x = jnp.pad(x, ((0, 0), (p_t, p_b), (p_l, p_r), (0, 0)))
            B, H, W, C = x.shape

    assert H % P == 0 and W % P == 0, "H, W must be divisible by patch size"
    Hp, Wp = H // P, W // P
    M = B * Hp * Wp
    K = C * P * P

    # --- parameters: accept raw PyTorch layout or a pre-prepared (hoisted) (K, E) ---
    if weight.ndim == 4:
        w2d, b2d = prepare_patch_embed_params(
            weight, bias, data_format=data_format, use_bf16_matmul=use_bf16_matmul)
    else:
        w2d = weight
        b2d = jnp.reshape(bias, (1, -1)).astype(jnp.float32)
    assert w2d.shape[0] == K, (w2d.shape, K)
    E = w2d.shape[1]

    # --- patchify (jit-fused wrapper glue; single HBM pass, no K padding) ---
    if data_format == "NCHW":
        patches = (x.reshape(B, C, Hp, P, Wp, P)
                    .transpose(0, 2, 4, 1, 3, 5)        # (B, Hp, Wp, C, P, P)
                    .reshape(M, K))
    else:  # NHWC: moves contiguous P*C chunks instead of single scalars
        patches = (x.reshape(B, Hp, P, Wp, P, C)
                    .transpose(0, 1, 3, 2, 4, 5)        # (B, Hp, Wp, P, P, C)
                    .reshape(M, K))

    if use_bf16_matmul:
        patches = patches.astype(jnp.bfloat16)
        w2d = w2d.astype(jnp.bfloat16)

    # Lane-dense E padding only when it pays off (production E > 128, not a multiple of
    # 128).  Small E (e.g. 32) keeps a full-E masked-store output block: fewer HBM bytes
    # and no post-kernel slice copy.
    Ep = _round_up(E, 128) if (E > 128 and E % 128 != 0) else E
    if Ep != E:
        w2d = jnp.pad(w2d, ((0, 0), (0, Ep - E)))
        b2d = jnp.pad(b2d, ((0, 0), (0, Ep - E)))

    tm_eff = _choose_tm(M, tm)
    out2d = _patch_embed_matmul(patches, w2d, b2d, tm=tm_eff, out_dtype=out_dtype)
    if Ep != E:
        out2d = out2d[:, :E]

    if output_layout == "NLC":     # (B, N, E): E stays lane-minor, no restore pass
        return out2d.reshape(B, Hp * Wp, E)
    if output_layout == "NHWC":
        return out2d.reshape(B, Hp, Wp, E)
    # Default: restore the NCHW conv-output layout of the PyTorch module.
    return out2d.reshape(B, Hp, Wp, E).transpose(0, 3, 1, 2)


def _reference_forward(x, weight, bias, patch_size):
    # Pure-JAX reference: stride==kernel conv via the same patchify + matmul (f32, HIGHEST).
    B, C, H, W = x.shape
    P = patch_size
    Hp, Wp = H // P, W // P
    E = weight.shape[0]
    patches = (x.reshape(B, C, Hp, P, Wp, P)
                .transpose(0, 2, 4, 1, 3, 5)
                .reshape(B * Hp * Wp, C * P * P))
    out = jnp.dot(patches, weight.reshape(E, -1).T,
                  precision=jax.lax.Precision.HIGHEST) + bias[None, :]
    return out.reshape(B, Hp, Wp, E).transpose(0, 3, 1, 2)


if __name__ == "__main__":
    key = jax.random.PRNGKey(0)
    kx, kw, kb, kx2 = jax.random.split(key, 4)

    # Small shapes consistent with PatchEmbed: img=16, patch=4, in_chans=4, embed_dim=32.
    B, C, H, W = 2, 4, 16, 16
    P, E = 4, 32

    x = jax.random.normal(kx, (B, C, H, W), dtype=jnp.float32)
    weight = jax.random.normal(kw, (E, C, P, P), dtype=jnp.float32) * 0.02
    bias = jax.random.normal(kb, (E,), dtype=jnp.float32) * 0.02
    ref = _reference_forward(x, weight, bias, P)

    # 1) Default fast path: bf16 MXU operands, f32 output, NCHW in/out to match the module.
    out = jax.block_until_ready(patch_embed_forward(x, weight, bias, patch_size=P))
    assert out.shape == (B, E, H // P, W // P), out.shape
    assert out.dtype == jnp.float32, out.dtype
    assert jnp.allclose(out, ref, atol=2e-2, rtol=2e-2), "mismatch vs reference (bf16 path)"

    # 2) Strict f32 path on a multi-tile ragged grid (M=72, tm=32 -> even-grid adjust).
    H2 = W2 = 24
    x2 = jax.random.normal(kx2, (B, C, H2, W2), dtype=jnp.float32)
    out2 = jax.block_until_ready(
        patch_embed_forward(x2, weight, bias, patch_size=P, tm=32, use_bf16_matmul=False))
    ref2 = _reference_forward(x2, weight, bias, P)
    assert out2.shape == (B, E, H2 // P, W2 // P), out2.shape
    assert jnp.allclose(out2, ref2, atol=1e-4, rtol=1e-4), "mismatch vs reference (f32 tiled)"

    # 3) TPU fast path: NHWC input + token-major (B, N, E) output + pre-prepared params.
    w2d, b2d = prepare_patch_embed_params(weight, bias, data_format="NHWC",
                                          use_bf16_matmul=False)
    x_nhwc = jnp.transpose(x, (0, 2, 3, 1))
    out3 = jax.block_until_ready(
        patch_embed_forward(x_nhwc, w2d, b2d, patch_size=P, use_bf16_matmul=False,
                            data_format="NHWC", output_layout="NLC"))
    ref3 = jnp.transpose(ref, (0, 2, 3, 1)).reshape(B, (H // P) * (W // P), E)
    assert out3.shape == (B, (H // P) * (W // P), E), out3.shape
    assert jnp.allclose(out3, ref3, atol=1e-4, rtol=1e-4), "mismatch vs reference (NHWC/NLC)"

    print("KERNEL_OK")
</pallas_src>

<mosaic_0001>
module attributes {stable_mosaic.version = 11 : i64} {
  func.func @_patch_embed_kernel(%arg0: i32, %arg1: memref<32x64xbf16, #tpu.memory_space<vmem>>, %arg2: memref<64x32xbf16, #tpu.memory_space<vmem>>, %arg3: memref<1x32xf32, #tpu.memory_space<vmem>>, %arg4: memref<32x32xf32, #tpu.memory_space<vmem>>) attributes {dimension_semantics = [#tpu.dimension_semantics<parallel>], iteration_bounds = array<i64: 1>, scalar_prefetch = 0 : i64, scratch_operands = 0 : i64, tpu.core_type = #tpu.core_type<tc>, window_params = [{transform_indices = @transform_0, window_bounds = array<i64: 32, 64>}, {pipeline_mode = #tpu.pipeline_mode<synchronous>, transform_indices = @transform_1, window_bounds = array<i64: 64, 32>}, {pipeline_mode = #tpu.pipeline_mode<synchronous>, transform_indices = @transform_2, window_bounds = array<i64: 1, 32>}, {transform_indices = @transform_3, window_bounds = array<i64: 32, 32>}]} {
    %c0 = arith.constant 0 : index
    %c0_0 = arith.constant 0 : index
    %0 = vector.load %arg1[%c0, %c0_0] : memref<32x64xbf16, #tpu.memory_space<vmem>>, vector<32x64xbf16>
    %c0_1 = arith.constant 0 : index
    %c0_2 = arith.constant 0 : index
    %1 = vector.load %arg2[%c0_1, %c0_2] : memref<64x32xbf16, #tpu.memory_space<vmem>>, vector<64x32xbf16>
    %cst = arith.constant dense<0.000000e+00> : vector<32x32xf32>
    %2 = tpu.matmul %0, %1, %cst {dimension_numbers = #tpu.dot_dimension_numbers<[1], [0], [0], [1], [0, 0, 1, 1], [], []>} : vector<32x64xbf16>, vector<64x32xbf16>, vector<32x32xf32> -> vector<32x32xf32>
    %c0_3 = arith.constant 0 : index
    %c0_4 = arith.constant 0 : index
    %3 = vector.load %arg3[%c0_3, %c0_4] : memref<1x32xf32, #tpu.memory_space<vmem>>, vector<1x32xf32>
    %4 = vector.broadcast %3 : vector<1x32xf32> to vector<32x32xf32>
    %5 = arith.addf %2, %4 : vector<32x32xf32>
    %c0_5 = arith.constant 0 : index
    %c0_6 = arith.constant 0 : index
    %6 = vector.load %arg4[%c0_5, %c0_6] : memref<32x32xf32, #tpu.memory_space<vmem>>, vector<32x32xf32>
    tpu.vector_store %arg4[%c0_5, %c0_6], %5 {strides = array<i32>} : memref<32x32xf32, #tpu.memory_space<vmem>>, vector<32x32xf32>,
    return
  }
  func.func @transform_0(%arg0: i32) -> (i32, i32) {
    %c0_i32 = arith.constant 0 : i32
    %c0_i32_0 = arith.constant 0 : i32
    return %arg0, %c0_i32 : i32, i32
  }
  func.func @transform_1(%arg0: i32) -> (i32, i32) {
    %c0_i32 = arith.constant 0 : i32
    %c0_i32_0 = arith.constant 0 : i32
    %c0_i32_1 = arith.constant 0 : i32
    return %c0_i32, %c0_i32_0 : i32, i32
  }
  func.func @transform_2(%arg0: i32) -> (i32, i32) {
    %c0_i32 = arith.constant 0 : i32
    %c0_i32_0 = arith.constant 0 : i32
    %c0_i32_1 = arith.constant 0 : i32
    return %c0_i32, %c0_i32_0 : i32, i32
  }
  func.func @transform_3(%arg0: i32) -> (i32, i32) {
    %c0_i32 = arith.constant 0 : i32
    %c0_i32_0 = arith.constant 0 : i32
    return %arg0, %c0_i32 : i32, i32
  }
}

</mosaic_0001>

<llo_original>
// kernel: patch_embed_forward.1
$region0: #{patch_embed_forward.1}
  #allocation0 [shape = 'u32[]', space=smem, size = 0x4, offset = 0x4, fixed_abs, tag = 'smem constant byte address 0x4 - core index']
  #allocation1 [shape = 'u32[144,128]{1,0:T(1,128)}', space=vmem, size = 0x12000, scoped, tag = 'internal scratch']
  %s0 = inlined_call_operand.vmem [shape: bf16[32,64], index: 0, kind: input, shape index: {}]
  %s1 = inlined_call_operand.vmem [shape: bf16[64,32], index: 1, kind: input, shape index: {}]
  %s2 = inlined_call_operand.vmem [shape: f32[1,32], index: 2, kind: input, shape index: {}]
  %s3 = inlined_call_operand.hbm [shape: f32[32,32], index: 3, kind: output, shape index: {}]
  %s4 = sld [smem:[#allocation0]]
  $region22: #{patch_embed_forward.1} parent=0
    _
  %s6 = ssub.s32 1, %s4
  %s7 = scalar_select 0, %s6, %s4
  $region1: #{patch_embed_forward.1} parent=0
    #allocation2 [shape = 'u8[16384]{0}', space=vmem, size = 0x4000, scoped, tag = 'output window, operand 0, single buffered']
    #allocation3 [shape = 's32[1]{0}', space=sflag, size = 0x4, scoped, tag = 'scoped memory for patch_embed_forward.1']
    %8 = vsyncpa [#allocation3], 0
    // Predicated region
    $region2: #{patch_embed_forward.1} parent=1 // pred_check
      _
    $region3: #{patch_embed_forward.1} parent=1 // pred_check_branch
      %10 = sbr.rel (0) target = $region5
    $region4: #{patch_embed_forward.1} parent=1 // pred_region
      _
    $region5: #{patch_embed_forward.1} parent=1 // pred_fallthru
      _
    // Predicated region
    $region6: #{patch_embed_forward.1} parent=1 // pred_check
      _
    $region7: #{patch_embed_forward.1} parent=1 // pred_check_branch
      %12 = sbr.rel (0) target = $region9
    $region8: #{patch_embed_forward.1} parent=1 // pred_region
      _
    $region9: #{patch_embed_forward.1} parent=1 // pred_fallthru
      _
    // Predicated region
    $region10: #{patch_embed_forward.1} parent=1 // pred_check
      _
    $region11: #{patch_embed_forward.1} parent=1 // pred_check_branch
      %14 = sbr.rel (0) target = $region13
    $region12: #{patch_embed_forward.1} parent=1 // pred_region
      _
    $region13: #{patch_embed_forward.1} parent=1 // pred_fallthru
      _
    %v16 = vld [vmem:[%s0] sm:$0xf]
    %v17 = vld [vmem:[%s0 + $0x4] sm:$0xf]
    %v18 = vld [vmem:[%s0 + $0x8] sm:$0xf]
    %v19 = vld [vmem:[%s0 + $0xc] sm:$0xf]
    %v20 = vld [vmem:[%s1] sm:$0xf]
    %v21 = vld [vmem:[%s1 + $0x4] sm:$0xf]
    %v22 = vld [vmem:[%s1 + $0x8] sm:$0xf]
    %v23 = vld [vmem:[%s1 + $0xc] sm:$0xf]
    %v24 = vld [vmem:[%s1 + $0x10] sm:$0xf]
    %v25 = vld [vmem:[%s1 + $0x14] sm:$0xf]
    %v26 = vld [vmem:[%s1 + $0x18] sm:$0xf]
    %v27 = vld [vmem:[%s1 + $0x1c] sm:$0xf]
    %v28 = vld [vmem:[%s2] sm:$0x1]
    %v30 = vlaneseq
    %v31 = vshrl.u32 %v30, 7
    %v32 = vsub.s32 0, %v31
    %v33 = vrot.slane %v28, %v32
    %v39 = vunpack.c.l.b16 %v16
    %v40 = vunpack.c.l.b16 %v17
    %v41 = vunpack.c.l.b16 %v18
    %v42 = vunpack.c.l.b16 %v19
    %v43 = vpack.c.b16 %v40, %v39
    %v44 = vpack.c.b16 %v42, %v41
    %v53 = vunpack.c.l.b16 %v20
    %v54 = vunpack.c.l.b16 %v21
    %v55 = vunpack.c.l.b16 %v22
    %v56 = vunpack.c.l.b16 %v23
    %v57 = vunpack.c.l.b16 %v24
    %v58 = vunpack.c.l.b16 %v25
    %v59 = vunpack.c.l.b16 %v26
    %v60 = vunpack.c.l.b16 %v27
    %v61 = vpack.c.b16 %v54, %v53
    %v62 = vpack.c.b16 %v56, %v55
    %v63 = vpack.c.b16 %v58, %v57
    %v64 = vpack.c.b16 %v60, %v59
    %vm69 = vcmask 523264
    %v71 = vsel %vm69, %v43, 0
    %v74 = vsel %vm69, %v44, 0
    %76 = vmatprep.subr.bf16.mxu0 0
    %77 = vmatpush1.bf16.msra.mxu0 %v61
    %78 = vmatprep.subr.bf16.mxu0 0
    %79 = vmatpush1.bf16.msra.mxu0 %v62
    %80 = vmatprep.subr.bf16.mxu0 0
    %81 = vmatpush1.bf16.msra.mxu0 %v63
    %82 = vmatprep.subr.bf16.mxu0 0
    %83 = vmatpush1.bf16.msra.mxu0 %v64
    %84 = vmatprep.subr.bf16.mxu0 0
    %85 = vmatpush1.bf16.msra.mxu0 0
    %86 = vmatprep.subr.bf16.mxu0 0
    %87 = vmatpush1.bf16.msra.mxu0 0
    %88 = vmatprep.subr.bf16.mxu0 0
    %89 = vmatpush1.bf16.msra.mxu0 0
    %90 = vmatprep.subr.bf16.mxu0 0
    %91 = vmatpush1.bf16.msra.mxu0 0
    %92 = vmatprep.subr.bf16.mxu0 0
    %93 = vmatpush1.bf16.msra.mxu0 0
    %94 = vmatprep.subr.bf16.mxu0 0
    %95 = vmatpush1.bf16.msra.mxu0 0
    %96 = vmatprep.subr.bf16.mxu0 0
    %97 = vmatpush1.bf16.msra.mxu0 0
    %98 = vmatprep.subr.bf16.mxu0 0
    %99 = vmatpush1.bf16.msra.mxu0 0
    %100 = vmatprep.subr.bf16.mxu0 0
    %101 = vmatpush1.bf16.msra.mxu0 0
    %102 = vmatprep.subr.bf16.mxu0 0
    %103 = vmatpush1.bf16.msra.mxu0 0
    %104 = vmatprep.subr.bf16.mxu0 0
    %105 = vmatpush1.bf16.msra.mxu0 0
    %106 = vmatprep.subr.bf16.mxu0 0
    %107 = vmatpush1.bf16.msra.mxu0 0
    %108 = vmatprep.mubr.bf16.mxu0 0
    %109 = vmatmul.mubr.bf16.gmra.mrb[0].mxu0 %v71
    %v110 = vpop.f32.mrb[0].mxu0
    %v111 = vadd.f32 %v33, %v110
    %v112 = vpop.f32.mrb[0].mxu0
    %v113 = vpop.f32.mrb[0].mxu0
    %v114 = vadd.f32 %v33, %v113
    %v115 = vpop.f32.mrb[0].mxu0
    %116 = vmatprep.mubr.bf16.mxu0 0
    %117 = vmatmul.mubr.bf16.gmra.mrb[0].mxu0 %v74
    %v118 = vpop.f32.mrb[0].mxu0
    %v119 = vadd.f32 %v33, %v118
    %v120 = vpop.f32.mrb[0].mxu0
    %v121 = vpop.f32.mrb[0].mxu0
    %v122 = vadd.f32 %v33, %v121
    %v123 = vpop.f32.mrb[0].mxu0
    %124 = vdwg.mxu0
    %vm125 = vcmask 261120
    %126 = vst.msk [vmem:[#allocation2] sm:$0xff] %vm125, %v111
    %127 = vst.msk [vmem:[#allocation2 + $0x8] sm:$0xff] %vm125, %v114
    %128 = vst.msk [vmem:[#allocation2 + $0x10] sm:$0xff] %vm125, %v119
    %129 = vst.msk [vmem:[#allocation2 + $0x18] sm:$0xff] %vm125, %v122
    // Predicated region
    $region14: #{patch_embed_forward.1} parent=1 // pred_check
      _
    $region15: #{patch_embed_forward.1} parent=1 // pred_check_branch
      %131 = sbr.rel (0) target = $region17
    $region16: #{patch_embed_forward.1} parent=1 // pred_region
      %s133 = ssub.s32 512, 512
      %134 = vsyncadd [#allocation3], %s133
      %s135 = sshll.u32 [#allocation2], 4
      %s136 = int_to_ptr.vmem [resolvable:$true] %s135
      %141 = dma.vmem_to_hbm [thread:$0]  %s136, 512, %s3, [#allocation3], 128, 128, 8
    $region17: #{patch_embed_forward.1} parent=1 // pred_fallthru
      _
    // Predicated region
    $region18: #{patch_embed_forward.1} parent=1 // pred_check
      _
    $region19: #{patch_embed_forward.1} parent=1 // pred_check_branch
      %143 = sbr.rel (0) target = $region21
    $region20: #{patch_embed_forward.1} parent=1 // pred_region
      %144 = dma.done [#allocation3], 512
    $region21: #{patch_embed_forward.1} parent=1 // pred_fallthru
      _
    %145 = vsyncpa [#allocation3], 1

</llo_original>
